<compile_context>
chip_gen: v7x
topology: tpu7x:2x2x1
jax: 0.10.0
libtpu: 0.0.40
codegen_flags: <defaults>
</compile_context>

<pallas_src>
import jax
import jax.numpy as jnp
from jax.experimental import pallas as pl
from jax.experimental.pallas import tpu as pltpu

LANES = 128      # vreg lane count (minor dim)
SUBLANES = 8     # f32 sublane count (second-minor dim)
# 256 groups * (8, 128) f32 = 1 MiB per tile.
DEFAULT_BLOCK_GROUPS = 256
VMEM_LIMIT_BYTES = 32 * 1024 * 1024


def _round_up(a: int, b: int) -> int:
    return (a + b - 1) // b * b


def _partial_sum_kernel(x_ref, psum_ref):
    # x_ref: (block_groups, 8, 128) f32 tile.  Reduce the leading (non-tiled)
    # dim -> (1, 8, 128): elementwise vreg adds on the VPU, no cross-lane work.
    psum_ref[...] = jnp.sum(x_ref[...], axis=0, keepdims=True)


def _subtract_kernel(mean_ref, x_ref, o_ref):
    # mean_ref: (1, 1) f32 scalar resident in SMEM; broadcast over the tile.
    o_ref[...] = x_ref[...] - mean_ref[0, 0]


def centered_layer(x, *, block_groups: int = DEFAULT_BLOCK_GROUPS):
    """x: any-shape array (NCHW in the PyTorch demo). Returns x - mean(x)."""
    orig_shape = x.shape
    orig_dtype = x.dtype
    n = x.size

    # Compute in f32 even if the input is narrower (accuracy, v5e VPU support).
    flat = jnp.ravel(x).astype(jnp.float32)

    # Lane-dense 3D slab: (groups, 8, 128), zero-padded.  Zeros don't perturb
    # the sum (mean divides by the true n) and padded tail is sliced off.
    groups = pl.cdiv(n, SUBLANES * LANES)
    block_groups = max(1, min(block_groups, groups))
    groups_pad = _round_up(groups, block_groups)
    n_pad = groups_pad * SUBLANES * LANES
    if n_pad != n:
        flat = jnp.pad(flat, (0, n_pad - n))
    x3d = flat.reshape(groups_pad, SUBLANES, LANES)
    num_tiles = groups_pad // block_groups

    cparams = pltpu.CompilerParams(
        dimension_semantics=("parallel",),
        vmem_limit_bytes=VMEM_LIMIT_BYTES,
    )

    # ---- Pass 1: per-tile partial sums (parallel reduce) -------------------
    partials = pl.pallas_call(
        _partial_sum_kernel,
        out_shape=jax.ShapeDtypeStruct((num_tiles, SUBLANES, LANES), jnp.float32),
        grid=(num_tiles,),
        in_specs=[
            pl.BlockSpec((block_groups, SUBLANES, LANES), lambda i: (i, 0, 0),
                         memory_space=pltpu.MemorySpace.VMEM),
        ],
        out_specs=pl.BlockSpec((1, SUBLANES, LANES), lambda i: (i, 0, 0),
                               memory_space=pltpu.MemorySpace.VMEM),
        compiler_params=cparams,
    )(x3d)

    # Tiny final reduction in XLA; static reciprocal (n is a Python int).
    mean = (jnp.sum(partials) * (1.0 / n)).reshape(1, 1)

    # ---- Pass 2: broadcast subtract (parallel over tiles) ------------------
    out3d = pl.pallas_call(
        _subtract_kernel,
        out_shape=jax.ShapeDtypeStruct((groups_pad, SUBLANES, LANES), jnp.float32),
        grid=(num_tiles,),
        in_specs=[
            pl.BlockSpec(memory_space=pltpu.MemorySpace.SMEM),  # mean scalar
            pl.BlockSpec((block_groups, SUBLANES, LANES), lambda i: (i, 0, 0),
                         memory_space=pltpu.MemorySpace.VMEM),
        ],
        out_specs=pl.BlockSpec((block_groups, SUBLANES, LANES), lambda i: (i, 0, 0),
                               memory_space=pltpu.MemorySpace.VMEM),
        compiler_params=cparams,
    )(mean, x3d)

    out = out3d.reshape(-1)[:n].reshape(orig_shape).astype(orig_dtype)
    return out


if __name__ == "__main__":
    key = jax.random.PRNGKey(0)

    # Primary check: the demo's NCHW shape.
    x = jax.random.normal(key, (2, 4, 16, 16), dtype=jnp.float32)
    y = centered_layer(x)
    jax.block_until_ready(y)
    ref = x - jnp.mean(x)
    assert jnp.allclose(y, ref, atol=1e-6), "mismatch vs reference (primary)"

    # Extra cheap checks: multi-tile grid path and a non-128-divisible size
    # (exercises the zero-padding + slice-off logic).
    y2 = centered_layer(x, block_groups=1)            # 2 tiles on the grid
    jax.block_until_ready(y2)
    assert jnp.allclose(y2, ref, atol=1e-6), "mismatch vs reference (multi-tile)"

    x3 = jax.random.normal(jax.random.PRNGKey(1), (2, 3, 5, 7), dtype=jnp.float32)
    y3 = centered_layer(x3)
    jax.block_until_ready(y3)
    ref3 = x3 - jnp.mean(x3)
    assert jnp.allclose(y3, ref3, atol=1e-6), "mismatch vs reference (padded)"

    print("KERNEL_OK")
</pallas_src>

<mosaic_0001>
module attributes {stable_mosaic.version = 11 : i64} {
  func.func @_partial_sum_kernel(%arg0: i32, %arg1: memref<2x8x128xf32, #tpu.memory_space<vmem>>, %arg2: memref<1x8x128xf32, #tpu.memory_space<vmem>>) attributes {dimension_semantics = [#tpu.dimension_semantics<parallel>], iteration_bounds = array<i64: 1>, scalar_prefetch = 0 : i64, scratch_operands = 0 : i64, tpu.core_type = #tpu.core_type<tc>, window_params = [{transform_indices = @transform_0, window_bounds = array<i64: 2, 8, 128>}, {transform_indices = @transform_1, window_bounds = array<i64: 1, 8, 128>}]} {
    %c0 = arith.constant 0 : index
    %c0_0 = arith.constant 0 : index
    %c0_1 = arith.constant 0 : index
    %0 = vector.load %arg1[%c0, %c0_0, %c0_1] : memref<2x8x128xf32, #tpu.memory_space<vmem>>, vector<2x8x128xf32>
    %cst = arith.constant dense<0.000000e+00> : vector<8x128xf32>
    %1 = vector.multi_reduction <add>, %0, %cst [0] : vector<2x8x128xf32> to vector<8x128xf32>
    %2 = vector.shape_cast %1 : vector<8x128xf32> to vector<1x8x128xf32>
    %c0_2 = arith.constant 0 : index
    %c0_3 = arith.constant 0 : index
    %c0_4 = arith.constant 0 : index
    %3 = vector.load %arg2[%c0_2, %c0_3, %c0_4] : memref<1x8x128xf32, #tpu.memory_space<vmem>>, vector<1x8x128xf32>
    tpu.vector_store %arg2[%c0_2, %c0_3, %c0_4], %2 {strides = array<i32>} : memref<1x8x128xf32, #tpu.memory_space<vmem>>, vector<1x8x128xf32>,
    return
  }
  func.func @transform_0(%arg0: i32) -> (i32, i32, i32) {
    %c0_i32 = arith.constant 0 : i32
    %c0_i32_0 = arith.constant 0 : i32
    %c0_i32_1 = arith.constant 0 : i32
    return %arg0, %c0_i32, %c0_i32_0 : i32, i32, i32
  }
  func.func @transform_1(%arg0: i32) -> (i32, i32, i32) {
    %c0_i32 = arith.constant 0 : i32
    %c0_i32_0 = arith.constant 0 : i32
    %c0_i32_1 = arith.constant 0 : i32
    return %arg0, %c0_i32, %c0_i32_0 : i32, i32, i32
  }
}

</mosaic_0001>

<llo_original>
// kernel: tpu_custom_call.1
$region0: #{tpu_custom_call.1}
  #allocation0 [shape = 'u32[]', space=smem, size = 0x4, offset = 0x4, fixed_abs, tag = 'smem constant byte address 0x4 - core index']
  #allocation1 [shape = 'u32[144,128]{1,0:T(1,128)}', space=vmem, size = 0x12000, scoped, tag = 'internal scratch']
  %s0 = inlined_call_operand.hbm [shape: f32[2,8,128], index: 0, kind: input, shape index: {}]
  %s1 = inlined_call_operand.hbm [shape: f32[1,8,128], index: 1, kind: output, shape index: {}]
  %s2 = sld [smem:[#allocation0]]
  $region18: #{tpu_custom_call.1} parent=0
    _
  %s4 = ssub.s32 1, %s2
  %s5 = scalar_select 0, %s4, %s2
  $region1: #{tpu_custom_call.1} parent=0
    #allocation2 [shape = 'u8[8192]{0}', space=vmem, size = 0x2000, scoped, tag = 'input window, operand 0, single buffered']
    #allocation3 [shape = 's32[1]{0}', space=sflag, size = 0x4, scoped, tag = 'scoped memory for tpu_custom_call.1']
    #allocation4 [shape = 's32[1]{0}', space=sflag, size = 0x4, scoped, tag = 'scoped memory for tpu_custom_call.1']
    #allocation5 [shape = 'u8[4096]{0}', space=vmem, size = 0x1000, scoped, tag = 'output window, operand 0, single buffered']
    %6 = vsyncpa [#allocation3], 0
    %7 = vsyncpa [#allocation4], 0
    // Predicated region
    $region2: #{tpu_custom_call.1} parent=1 // pred_check
      _
    $region3: #{tpu_custom_call.1} parent=1 // pred_check_branch
      %9 = sbr.rel (0) target = $region5
    $region4: #{tpu_custom_call.1} parent=1 // pred_region
      %s11 = ssub.s32 256, 256
      %12 = vsyncadd [#allocation3], %s11
      %s13 = sshll.u32 [#allocation2], 4
      %s14 = int_to_ptr.vmem [resolvable:$true] %s13
      %19 = dma.hbm_to_vmem [thread:$0]  %s0, 256, %s14, [#allocation3], 128, 128, 8
    $region5: #{tpu_custom_call.1} parent=1 // pred_fallthru
      _
    // Predicated region
    $region6: #{tpu_custom_call.1} parent=1 // pred_check
      _
    $region7: #{tpu_custom_call.1} parent=1 // pred_check_branch
      %21 = sbr.rel (0) target = $region9
    $region8: #{tpu_custom_call.1} parent=1 // pred_region
      %22 = dma.done [#allocation3], 256
    $region9: #{tpu_custom_call.1} parent=1 // pred_fallthru
      _
    %v23 = vld [vmem:[#allocation2] sm:$0xff]
    %v24 = vld [vmem:[#allocation2 + $0x8] sm:$0xff]
    %v25 = vadd.f32 %v23, %v24
    %26 = vst [vmem:[#allocation5] sm:$0xff] %v25
    // Predicated region
    $region10: #{tpu_custom_call.1} parent=1 // pred_check
      _
    $region11: #{tpu_custom_call.1} parent=1 // pred_check_branch
      %28 = sbr.rel (0) target = $region13
    $region12: #{tpu_custom_call.1} parent=1 // pred_region
      %s30 = ssub.s32 128, 128
      %31 = vsyncadd [#allocation4], %s30
      %s33 = sshll.u32 [#allocation5], 4
      %s34 = int_to_ptr.vmem [resolvable:$true] %s33
      %36 = dma.vmem_to_hbm [thread:$0]  %s34, 128, %s1, [#allocation4]
    $region13: #{tpu_custom_call.1} parent=1 // pred_fallthru
      _
    // Predicated region
    $region14: #{tpu_custom_call.1} parent=1 // pred_check
      _
    $region15: #{tpu_custom_call.1} parent=1 // pred_check_branch
      %38 = sbr.rel (0) target = $region17
    $region16: #{tpu_custom_call.1} parent=1 // pred_region
      %39 = dma.done [#allocation4], 128
    $region17: #{tpu_custom_call.1} parent=1 // pred_fallthru
      _
    %40 = vsyncpa [#allocation3], 1
    %41 = vsyncpa [#allocation4], 1

</llo_original>
